<compile_context>
chip_gen: v5e
topology: v5e:2x2
jax: 0.10.0
libtpu: 0.0.40
codegen_flags: <defaults>
</compile_context>

<pallas_src>
import math
import functools

import jax
import jax.numpy as jnp
from jax import lax
from jax.experimental import pallas as pl
from jax.experimental.pallas import tpu as pltpu


def _vmem_limit_bytes():
    cap = 0
    try:
        info = pltpu.get_tpu_info()
        for name in ("vmem_capacity_bytes", "vmem_size_bytes"):
            v = getattr(info, name, None)
            if v:
                cap = int(v)
                break
    except Exception:
        cap = 0
    if cap <= 0:
        return 48 * 1024 * 1024            # safe on every generation (v7x: 64 MiB)
    return int(min((cap * 3) // 4, 100 * 1024 * 1024))


_VMEM_LIMIT = _vmem_limit_bytes()


def _round_up(x, m):
    return ((x + m - 1) // m) * m


def _pick(dim, pref, align=8):
    """Largest tile <= pref that is a multiple of `align` and divides `dim`.
    Falls back to the full extent only for small shapes (big, padded axes are
    always given a clean divisor by construction)."""
    if dim <= pref:
        return dim
    t = (pref // align) * align
    while t >= align:
        if dim % t == 0:
            return t
        t -= align
    return dim


def _layernorm(x, gamma, beta):
    mu = jnp.mean(x, axis=-1, keepdims=True)
    xc = x - mu
    var = jnp.mean(xc * xc, axis=-1, keepdims=True)
    return (xc * lax.rsqrt(var + 1e-5)) * gamma + beta


# ---------------- fused LayerNorm + Linear (xhat cached in scratch, bf16 out) ----------------

def _ln_linear_kernel(x_ref, g_ref, b_ref, w_ref, bias_ref, o_ref, xhat_sc):
    @pl.when(pl.program_id(1) == 0)
    def _():
        xhat_sc[...] = _layernorm(x_ref[...], g_ref[...], b_ref[...]).astype(jnp.bfloat16)
    o_ref[...] = (jnp.dot(xhat_sc[...], w_ref[...],
                          preferred_element_type=jnp.float32)
                  + bias_ref[...]).astype(o_ref.dtype)


def ln_linear(x2d, gamma, beta, w, bias, *, tm=256, tn=512,
              out_dtype=jnp.bfloat16):
    N, C = x2d.shape
    Cout = w.shape[1]
    tm = _pick(N, tm, 8)
    tn = _pick(Cout, tn, 128)
    return pl.pallas_call(
        _ln_linear_kernel,
        grid=(N // tm, Cout // tn),
        out_shape=jax.ShapeDtypeStruct((N, Cout), out_dtype),
        in_specs=[pl.BlockSpec((tm, C), lambda i, j: (i, 0)),
                  pl.BlockSpec((1, C), lambda i, j: (0, 0)),
                  pl.BlockSpec((1, C), lambda i, j: (0, 0)),
                  pl.BlockSpec((C, tn), lambda i, j: (0, j)),
                  pl.BlockSpec((1, tn), lambda i, j: (0, j))],
        out_specs=pl.BlockSpec((tm, tn), lambda i, j: (i, j)),
        scratch_shapes=[pltpu.VMEM((tm, C), jnp.bfloat16)],
        compiler_params=pltpu.CompilerParams(
            dimension_semantics=("parallel", "arbitrary"),
            vmem_limit_bytes=_VMEM_LIMIT),
    )(x2d, gamma.reshape(1, C), beta.reshape(1, C), w, bias.reshape(1, Cout))


# ---------------- tiled Linear + bias + residual (K-accumulated) ----------------

def _linear_residual_kernel(x_ref, w_ref, bias_ref, res_ref, o_ref, acc_ref):
    k = pl.program_id(2)

    @pl.when(k == 0)
    def _():
        acc_ref[...] = jnp.zeros_like(acc_ref)

    acc_ref[...] += jnp.dot(x_ref[...].astype(jnp.bfloat16), w_ref[...],
                            preferred_element_type=jnp.float32)

    @pl.when(k == pl.num_programs(2) - 1)
    def _():
        o_ref[...] = acc_ref[...] + bias_ref[...] + res_ref[...]


def linear_residual(x2d, w, bias, res, *, tm=256, tn=256, tk=512):
    N, Cin = x2d.shape
    Cout = w.shape[1]
    tm = _pick(N, tm, 8)
    tn = _pick(Cout, tn, 128)
    tk = _pick(Cin, tk, 128)
    return pl.pallas_call(
        _linear_residual_kernel,
        grid=(N // tm, Cout // tn, Cin // tk),
        out_shape=jax.ShapeDtypeStruct((N, Cout), jnp.float32),
        in_specs=[pl.BlockSpec((tm, tk), lambda i, j, k: (i, k)),
                  pl.BlockSpec((tk, tn), lambda i, j, k: (k, j)),
                  pl.BlockSpec((1, tn), lambda i, j, k: (0, j)),
                  pl.BlockSpec((tm, tn), lambda i, j, k: (i, j))],
        out_specs=pl.BlockSpec((tm, tn), lambda i, j, k: (i, j)),
        scratch_shapes=[pltpu.VMEM((tm, tn), jnp.float32)],
        compiler_params=pltpu.CompilerParams(
            dimension_semantics=("parallel", "parallel", "arbitrary"),
            vmem_limit_bytes=_VMEM_LIMIT),
    )(x2d, w, bias.reshape(1, Cout), res)


# -------- fused LayerNorm + MLP (fc -> GELU -> proj) + residual, hidden-dim tiled --------

def _ln_mlp_kernel(x_ref, g_ref, b_ref, w1_ref, b1_ref, w2_ref, b2_ref, o_ref,
                   xhat_sc, acc_sc):
    j = pl.program_id(1)

    @pl.when(j == 0)
    def _():
        xhat_sc[...] = _layernorm(x_ref[...], g_ref[...], b_ref[...]).astype(jnp.bfloat16)
        acc_sc[...] = jnp.zeros_like(acc_sc)

    h = jnp.dot(xhat_sc[...], w1_ref[...],
                preferred_element_type=jnp.float32) + b1_ref[...]
    c = math.sqrt(2.0 / math.pi)                     # GELU(approximate='tanh'), f32 math
    h = 0.5 * h * (1.0 + jnp.tanh(c * (h + 0.044715 * h * h * h)))
    acc_sc[...] += jnp.dot(h.astype(jnp.bfloat16), w2_ref[...],
                           preferred_element_type=jnp.float32)

    @pl.when(j == pl.num_programs(1) - 1)
    def _():
        o_ref[...] = x_ref[...] + acc_sc[...] + b2_ref[...]    # fused residual add


def ln_mlp_residual(x2d, gamma, beta, w1, b1, w2, b2, *, tm=256, th=1024):
    N, C = x2d.shape
    Hdim = w1.shape[1]
    tm = _pick(N, tm, 8)
    th = _pick(Hdim, th, 128)        # stream w1/w2 hidden tiles: fits v7x 64 MiB VMEM
    return pl.pallas_call(
        _ln_mlp_kernel,
        grid=(N // tm, Hdim // th),
        out_shape=jax.ShapeDtypeStruct((N, C), jnp.float32),
        in_specs=[pl.BlockSpec((tm, C), lambda i, j: (i, 0)),
                  pl.BlockSpec((1, C), lambda i, j: (0, 0)),
                  pl.BlockSpec((1, C), lambda i, j: (0, 0)),
                  pl.BlockSpec((C, th), lambda i, j: (0, j)),
                  pl.BlockSpec((1, th), lambda i, j: (0, j)),
                  pl.BlockSpec((th, C), lambda i, j: (j, 0)),
                  pl.BlockSpec((1, C), lambda i, j: (0, 0))],
        out_specs=pl.BlockSpec((tm, C), lambda i, j: (i, 0)),
        scratch_shapes=[pltpu.VMEM((tm, C), jnp.bfloat16),
                        pltpu.VMEM((tm, C), jnp.float32)],
        compiler_params=pltpu.CompilerParams(
            dimension_semantics=("parallel", "arbitrary"),
            vmem_limit_bytes=_VMEM_LIMIT),
    )(x2d, gamma.reshape(1, C), beta.reshape(1, C),
      w1, b1.reshape(1, Hdim), w2, b2.reshape(1, C))


# -------- flash-style causal attention: all heads per program, qkv read in place --------

def _flash_attn_kernel(q_ref, k_ref, v_ref, o_ref, m_sc, l_sc, acc_sc,
                       *, scale, tq, tk, n_head, hd):
    qi = pl.program_id(1)
    ki = pl.program_id(2)

    @pl.when(ki == 0)
    def _():
        m_sc[...] = jnp.full_like(m_sc, -jnp.inf)
        l_sc[...] = jnp.zeros_like(l_sc)
        acc_sc[...] = jnp.zeros_like(acc_sc)

    # Causal: skip compute for kv tiles entirely above the diagonal.
    # TODO(synk): the BlockSpec pipeline still DMAs those tiles; an in-kernel kv
    # loop bounded by qi (k/v in pl.ANY + manual copies) would also skip the DMA.
    @pl.when(ki * tk <= qi * tq + (tq - 1))
    def _():
        row = qi * tq + lax.broadcasted_iota(jnp.int32, (tq, tk), 0)
        col = ki * tk + lax.broadcasted_iota(jnp.int32, (tq, tk), 1)
        causal = col <= row
        q = q_ref[0]                                  # (tq, C) bf16
        k = k_ref[0]                                  # (tk, C) bf16
        v = v_ref[0]                                  # (tk, C) bf16
        for h in range(n_head):                       # static unroll over heads
            sl = slice(h * hd, (h + 1) * hd)
            # contract head dims directly: no transpose before the MXU
            s = lax.dot_general(q[:, sl], k[:, sl], (((1,), (1,)), ((), ())),
                                preferred_element_type=jnp.float32) * scale
            s = jnp.where(causal, s, -1e30)
            m_prev = m_sc[h]
            m_new = jnp.maximum(m_prev, s.max(axis=-1, keepdims=True))
            alpha = jnp.exp(m_prev - m_new)
            p = jnp.where(causal, jnp.exp(s - m_new), 0.0)   # explicit zeroing
            l_sc[h] = alpha * l_sc[h] + p.sum(axis=-1, keepdims=True)
            acc_sc[h] = alpha * acc_sc[h] + jnp.dot(
                p.astype(jnp.bfloat16), v[:, sl],
                preferred_element_type=jnp.float32)
            m_sc[h] = m_new

    @pl.when(ki == pl.num_programs(2) - 1)
    def _():
        # TODO(synk): per-head 64-lane stores; packing heads into one lane-dense
        # store would remove the masked vst epilogue.
        for h in range(n_head):
            o_ref[0, :, h * hd:(h + 1) * hd] = (
                acc_sc[h] * pl.reciprocal(l_sc[h], approx=True)
            ).astype(o_ref.dtype)


def causal_attention(qkv, n_head, *, tq=256, tkv=512):
    """qkv: (B, T, 3C) bf16 from the fused LN+QKV kernel; returns (B, T, C) bf16."""
    B, T, C3 = qkv.shape
    C = C3 // 3
    hd = C // n_head
    tq = _pick(T, tq, 8)
    tkv = _pick(T, tkv, 8)
    kern = functools.partial(_flash_attn_kernel, scale=1.0 / math.sqrt(hd),
                             tq=tq, tk=tkv, n_head=n_head, hd=hd)
    if C % 128 == 0:
        # Pick q/k/v straight out of the packed (B, T, 3C) tensor via the
        # BlockSpec last-axis block index -> no XLA head/qkv transposes at all.
        q_spec = pl.BlockSpec((1, tq, C), lambda b, i, j: (b, i, 0))
        k_spec = pl.BlockSpec((1, tkv, C), lambda b, i, j: (b, j, 1))
        v_spec = pl.BlockSpec((1, tkv, C), lambda b, i, j: (b, j, 2))
        args = (qkv, qkv, qkv)
    else:
        # TODO(synk): fallback for C not a lane multiple splits q/k/v in XLA.
        q, k, v = jnp.split(qkv, 3, axis=-1)
        q_spec = pl.BlockSpec((1, tq, C), lambda b, i, j: (b, i, 0))
        k_spec = pl.BlockSpec((1, tkv, C), lambda b, i, j: (b, j, 0))
        v_spec = pl.BlockSpec((1, tkv, C), lambda b, i, j: (b, j, 0))
        args = (q, k, v)
    out_spec = pl.BlockSpec((1, tq, C), lambda b, i, j: (b, i, 0))
    return pl.pallas_call(
        kern,
        grid=(B, T // tq, T // tkv),
        out_shape=jax.ShapeDtypeStruct((B, T, C), jnp.bfloat16),
        in_specs=[q_spec, k_spec, v_spec],
        out_specs=out_spec,
        scratch_shapes=[pltpu.VMEM((n_head, tq, 1), jnp.float32),
                        pltpu.VMEM((n_head, tq, 1), jnp.float32),
                        pltpu.VMEM((n_head, tq, hd), jnp.float32)],
        compiler_params=pltpu.CompilerParams(
            dimension_semantics=("parallel", "parallel", "arbitrary"),
            vmem_limit_bytes=_VMEM_LIMIT),
    )(*args)


# -------- fused final LayerNorm + weight-tied lm_head (padded vocab, optional CE loss) --------

def _ln_lm_head_kernel(x_ref, g_ref, b_ref, w_ref, o_ref, xhat_sc):
    @pl.when(pl.program_id(1) == 0)
    def _():
        xhat_sc[...] = _layernorm(x_ref[...], g_ref[...], b_ref[...]).astype(jnp.bfloat16)
    o_ref[...] = lax.dot_general(xhat_sc[...], w_ref[...],
                                 (((1,), (1,)), ((), ())),
                                 preferred_element_type=jnp.float32)


def _ln_lm_head_loss_kernel(x_ref, g_ref, b_ref, w_ref, tgt_ref, o_ref, loss_ref,
                            xhat_sc, m_sc, l_sc, t_sc, *, vocab, tn):
    j = pl.program_id(1)

    @pl.when(j == 0)
    def _():
        xhat_sc[...] = _layernorm(x_ref[...], g_ref[...], b_ref[...]).astype(jnp.bfloat16)
        m_sc[...] = jnp.full_like(m_sc, -jnp.inf)
        l_sc[...] = jnp.zeros_like(l_sc)
        t_sc[...] = jnp.zeros_like(t_sc)

    s = lax.dot_general(xhat_sc[...], w_ref[...], (((1,), (1,)), ((), ())),
                        preferred_element_type=jnp.float32)     # (tm, tn)
    o_ref[...] = s
    col = j * tn + lax.broadcasted_iota(jnp.int32, s.shape, 1)
    s_m = jnp.where(col < vocab, s, -1e30)           # mask padded vocab columns
    m_prev = m_sc[...]
    m_new = jnp.maximum(m_prev, s_m.max(axis=-1, keepdims=True))
    l_sc[...] = (jnp.exp(m_prev - m_new) * l_sc[...]
                 + jnp.exp(s_m - m_new).sum(axis=-1, keepdims=True))
    t_sc[...] += jnp.sum(jnp.where(col == tgt_ref[...], s, 0.0),
                         axis=-1, keepdims=True)
    m_sc[...] = m_new

    @pl.when(j == pl.num_programs(1) - 1)
    def _():
        # -log softmax(target) = logsumexp(logits) - logit[target]
        loss_ref[...] = m_sc[...] + jnp.log(l_sc[...]) - t_sc[...]


def ln_lm_head(x2d, gamma, beta, wte_lm, vocab, targets=None, *, tm=512, tn=512):
    N, C = x2d.shape
    Vp = wte_lm.shape[0]                              # padded vocab (multiple of 128)
    tm = _pick(N, tm, 8)
    tn = _pick(Vp, tn, 128)
    cparams = pltpu.CompilerParams(
        dimension_semantics=("parallel", "arbitrary"),
        vmem_limit_bytes=_VMEM_LIMIT)
    x_spec = pl.BlockSpec((tm, C), lambda i, j: (i, 0))
    g_spec = pl.BlockSpec((1, C), lambda i, j: (0, 0))
    w_spec = pl.BlockSpec((tn, C), lambda i, j: (j, 0))   # wte streamed bf16, x @ wte^T
    o_spec = pl.BlockSpec((tm, tn), lambda i, j: (i, j))

    if targets is None:
        logits = pl.pallas_call(
            _ln_lm_head_kernel,
            grid=(N // tm, Vp // tn),
            out_shape=jax.ShapeDtypeStruct((N, Vp), jnp.float32),
            in_specs=[x_spec, g_spec, g_spec, w_spec],
            out_specs=o_spec,
            scratch_shapes=[pltpu.VMEM((tm, C), jnp.bfloat16)],
            compiler_params=cparams,
        )(x2d, gamma.reshape(1, C), beta.reshape(1, C), wte_lm)
        return logits, None

    kern = functools.partial(_ln_lm_head_loss_kernel, vocab=vocab, tn=tn)
    logits, per_row = pl.pallas_call(
        kern,
        grid=(N // tm, Vp // tn),
        out_shape=(jax.ShapeDtypeStruct((N, Vp), jnp.float32),
                   jax.ShapeDtypeStruct((N, 1), jnp.float32)),
        in_specs=[x_spec, g_spec, g_spec, w_spec,
                  pl.BlockSpec((tm, 1), lambda i, j: (i, 0))],
        out_specs=(o_spec, pl.BlockSpec((tm, 1), lambda i, j: (i, 0))),
        scratch_shapes=[pltpu.VMEM((tm, C), jnp.bfloat16),
                        pltpu.VMEM((tm, 1), jnp.float32),
                        pltpu.VMEM((tm, 1), jnp.float32),
                        pltpu.VMEM((tm, 1), jnp.float32)],
        compiler_params=cparams,
    )(x2d, gamma.reshape(1, C), beta.reshape(1, C), wte_lm,
      targets.reshape(N, 1).astype(jnp.int32))
    return logits, per_row


# ---------------------------- parameters ----------------------------

def init_params(key, cfg):
    V, C, L, block = (cfg['vocab_size'], cfg['n_embd'],
                      cfg['n_layer'], cfg['block_size'])
    Vp = _round_up(V, 128)
    std = 0.02
    proj_std = 0.02 * (2 * L) ** -0.5   # NANOGPT_SCALE_INIT on c_proj layers
    keys = jax.random.split(key, 2 + 4 * L)
    wte = jax.random.normal(keys[0], (V, C), jnp.float32) * std
    params = {
        'wte': wte,                                                 # f32 for the gather
        # weight-tied lm_head matrix: bf16 copy, vocab padded to a lane multiple
        'wte_lm': jnp.pad(wte.astype(jnp.bfloat16), ((0, Vp - V), (0, 0))),
        'wpe': jax.random.normal(keys[1], (block, C), jnp.float32) * std,
        'ln_f_g': jnp.ones((C,), jnp.float32),
        'ln_f_b': jnp.zeros((C,), jnp.float32),
        'layers': [],
    }
    wdt = jnp.bfloat16   # MXU weights in bf16; TODO(synk): fp8 weight path on v7x
    for l in range(L):
        k1, k2, k3, k4 = keys[2 + 4 * l: 6 + 4 * l]
        params['layers'].append(dict(
            ln1_g=jnp.ones((C,), jnp.float32),
            ln1_b=jnp.zeros((C,), jnp.float32),
            attn_w=(jax.random.normal(k1, (C, 3 * C), jnp.float32) * std).astype(wdt),
            attn_b=jnp.zeros((3 * C,), jnp.float32),
            attn_proj_w=(jax.random.normal(k2, (C, C), jnp.float32) * proj_std).astype(wdt),
            attn_proj_b=jnp.zeros((C,), jnp.float32),
            ln2_g=jnp.ones((C,), jnp.float32),
            ln2_b=jnp.zeros((C,), jnp.float32),
            fc_w=(jax.random.normal(k3, (C, 4 * C), jnp.float32) * std).astype(wdt),
            fc_b=jnp.zeros((4 * C,), jnp.float32),
            proj_w=(jax.random.normal(k4, (4 * C, C), jnp.float32) * proj_std).astype(wdt),
            proj_b=jnp.zeros((C,), jnp.float32),
        ))
    return params


# ---------------------------- forward ----------------------------

def gpt_forward(params, idx, cfg, targets=None):
    B, T = idx.shape
    C, H = cfg['n_embd'], cfg['n_head']
    V = cfg['vocab_size']
    assert T <= cfg['block_size']

    # TODO(synk): embedding gathers kept in plain JAX (data-dependent gather).
    tok_emb = jnp.take(params['wte'], idx, axis=0)        # (B, T, C)
    pos_emb = params['wpe'][:T]                           # (T, C)
    x2d = (tok_emb + pos_emb[None, :, :]).reshape(B * T, C)

    for p in params['layers']:
        # fused LN1 + QKV projection, bf16 activation writeback
        qkv = ln_linear(x2d, p['ln1_g'], p['ln1_b'], p['attn_w'], p['attn_b'])
        # flash attention reads heads straight from (B, T, 3C); bf16 (B, T, C) out
        y = causal_attention(qkv.reshape(B, T, 3 * C), H)
        # fused output projection + residual add (residual stream stays f32)
        x2d = linear_residual(y.reshape(B * T, C),
                              p['attn_proj_w'], p['attn_proj_b'], x2d)
        # fused LN2 + fc + GELU + proj + residual, hidden dim streamed
        x2d = ln_mlp_residual(x2d, p['ln2_g'], p['ln2_b'],
                              p['fc_w'], p['fc_b'], p['proj_w'], p['proj_b'])

    tgt2d = None if targets is None else targets.reshape(B * T)
    logits_pad, per_row = ln_lm_head(x2d, params['ln_f_g'], params['ln_f_b'],
                                     params['wte_lm'], V, targets=tgt2d)
    # TODO(synk): slicing off the padded vocab copies the logits; at scale consume
    # the padded logits / fused loss directly instead of materializing (B, T, V).
    logits = logits_pad[:, :V].reshape(B, T, V)
    loss = None if per_row is None else jnp.mean(per_row)
    return logits, loss


# ---------------------------- main ----------------------------

if __name__ == "__main__":
    # Small shapes; n_embd a lane multiple so the transpose-free attention path runs.
    cfg = dict(block_size=32, vocab_size=160, n_layer=2, n_head=2, n_embd=128)
    B, T = 2, 16

    key = jax.random.PRNGKey(0)
    k_params, k_idx, k_tgt = jax.random.split(key, 3)
    params = init_params(k_params, cfg)
    idx = jax.random.randint(k_idx, (B, T), 0, cfg['vocab_size'], dtype=jnp.int32)
    tgt = jax.random.randint(k_tgt, (B, T), 0, cfg['vocab_size'], dtype=jnp.int32)

    # logits-only path
    logits, _ = gpt_forward(params, idx, cfg, targets=None)
    logits = jax.block_until_ready(logits)
    assert logits.shape == (B, T, cfg['vocab_size'])
    assert bool(jnp.all(jnp.isfinite(logits)))

    # fused cross-entropy path
    logits2, loss = gpt_forward(params, idx, cfg, targets=tgt)
    loss = jax.block_until_ready(loss)
    assert bool(jnp.isfinite(loss))

    print("KERNEL_OK")
</pallas_src>

<mosaic_0001>
module attributes {stable_mosaic.version = 11 : i64} {
  func.func @_ln_linear_kernel(%arg0: i32, %arg1: i32, %arg2: memref<32x128xf32, #tpu.memory_space<vmem>>, %arg3: memref<1x128xf32, #tpu.memory_space<vmem>>, %arg4: memref<1x128xf32, #tpu.memory_space<vmem>>, %arg5: memref<128x384xbf16, #tpu.memory_space<vmem>>, %arg6: memref<1x384xf32, #tpu.memory_space<vmem>>, %arg7: memref<32x384xbf16, #tpu.memory_space<vmem>>, %arg8: memref<32x128xbf16, #tpu.memory_space<vmem>>) attributes {dimension_semantics = [#tpu.dimension_semantics<parallel>, #tpu.dimension_semantics<arbitrary>], iteration_bounds = array<i64: 1, 1>, scalar_prefetch = 0 : i64, scratch_operands = 1 : i64, tpu.core_type = #tpu.core_type<tc>, window_params = [{transform_indices = @transform_0, window_bounds = array<i64: 32, 128>}, {pipeline_mode = #tpu.pipeline_mode<synchronous>, transform_indices = @transform_1, window_bounds = array<i64: 1, 128>}, {pipeline_mode = #tpu.pipeline_mode<synchronous>, transform_indices = @transform_2, window_bounds = array<i64: 1, 128>}, {transform_indices = @transform_3, window_bounds = array<i64: 128, 384>}, {transform_indices = @transform_4, window_bounds = array<i64: 1, 384>}, {transform_indices = @transform_5, window_bounds = array<i64: 32, 384>}]} {
    %c0_i32 = arith.constant 0 : i32
    %0 = arith.cmpi eq, %arg1, %c0_i32 : i32
    %1 = arith.extui %0 : i1 to i32
    %c0_i32_0 = arith.constant 0 : i32
    %2 = arith.cmpi ne, %1, %c0_i32_0 : i32
    scf.if %2 {
      %c0_8 = arith.constant 0 : index
      %c0_9 = arith.constant 0 : index
      %11 = vector.load %arg2[%c0_8, %c0_9] : memref<32x128xf32, #tpu.memory_space<vmem>>, vector<32x128xf32>
      %c0_10 = arith.constant 0 : index
      %c0_11 = arith.constant 0 : index
      %12 = vector.load %arg3[%c0_10, %c0_11] : memref<1x128xf32, #tpu.memory_space<vmem>>, vector<1x128xf32>
      %c0_12 = arith.constant 0 : index
      %c0_13 = arith.constant 0 : index
      %13 = vector.load %arg4[%c0_12, %c0_13] : memref<1x128xf32, #tpu.memory_space<vmem>>, vector<1x128xf32>
      %cst_14 = arith.constant dense<0.000000e+00> : vector<32xf32>
      %14 = vector.multi_reduction <add>, %11, %cst_14 [1] : vector<32x128xf32> to vector<32xf32>
      %15 = vector.shape_cast %14 : vector<32xf32> to vector<32x1xf32>
      %cst_15 = arith.constant 1.280000e+02 : f32
      %16 = vector.broadcast %cst_15 : f32 to vector<32x1xf32>
      %17 = arith.divf %15, %16 : vector<32x1xf32>
      %18 = vector.broadcast %17 : vector<32x1xf32> to vector<32x128xf32>
      %19 = arith.subf %11, %18 : vector<32x128xf32>
      %20 = arith.mulf %19, %19 : vector<32x128xf32>
      %cst_16 = arith.constant dense<0.000000e+00> : vector<32xf32>
      %21 = vector.multi_reduction <add>, %20, %cst_16 [1] : vector<32x128xf32> to vector<32xf32>
      %22 = vector.shape_cast %21 : vector<32xf32> to vector<32x1xf32>
      %cst_17 = arith.constant 1.280000e+02 : f32
      %23 = vector.broadcast %cst_17 : f32 to vector<32x1xf32>
      %24 = arith.divf %22, %23 : vector<32x1xf32>
      %cst_18 = arith.constant 9.99999974E-6 : f32
      %25 = vector.broadcast %cst_18 : f32 to vector<32x1xf32>
      %26 = arith.addf %24, %25 : vector<32x1xf32>
      %27 = math.rsqrt %26 : vector<32x1xf32>
      %28 = vector.broadcast %27 : vector<32x1xf32> to vector<32x128xf32>
      %29 = arith.mulf %19, %28 : vector<32x128xf32>
      %30 = vector.broadcast %12 : vector<1x128xf32> to vector<32x128xf32>
      %31 = arith.mulf %29, %30 : vector<32x128xf32>
      %32 = vector.broadcast %13 : vector<1x128xf32> to vector<32x128xf32>
      %33 = arith.addf %31, %32 : vector<32x128xf32>
      %34 = arith.truncf %33 : vector<32x128xf32> to vector<32x128xbf16>
      %c0_19 = arith.constant 0 : index
      %c0_20 = arith.constant 0 : index
      %35 = vector.load %arg8[%c0_19, %c0_20] : memref<32x128xbf16, #tpu.memory_space<vmem>>, vector<32x128xbf16>
      tpu.vector_store %arg8[%c0_19, %c0_20], %34 {strides = array<i32>} : memref<32x128xbf16, #tpu.memory_space<vmem>>, vector<32x128xbf16>,
    } else {
    }
    %c0 = arith.constant 0 : index
    %c0_1 = arith.constant 0 : index
    %3 = vector.load %arg8[%c0, %c0_1] : memref<32x128xbf16, #tpu.memory_space<vmem>>, vector<32x128xbf16>
    %c0_2 = arith.constant 0 : index
    %c0_3 = arith.constant 0 : index
    %4 = vector.load %arg5[%c0_2, %c0_3] : memref<128x384xbf16, #tpu.memory_space<vmem>>, vector<128x384xbf16>
    %cst = arith.constant dense<0.000000e+00> : vector<32x384xf32>
    %5 = tpu.matmul %3, %4, %cst {dimension_numbers = #tpu.dot_dimension_numbers<[1], [0], [0], [1], [0, 0, 1, 1], [], []>} : vector<32x128xbf16>, vector<128x384xbf16>, vector<32x384xf32> -> vector<32x384xf32>
    %c0_4 = arith.constant 0 : index
    %c0_5 = arith.constant 0 : index
    %6 = vector.load %arg6[%c0_4, %c0_5] : memref<1x384xf32, #tpu.memory_space<vmem>>, vector<1x384xf32>
    %7 = vector.broadcast %6 : vector<1x384xf32> to vector<32x384xf32>
    %8 = arith.addf %5, %7 : vector<32x384xf32>
    %9 = arith.truncf %8 : vector<32x384xf32> to vector<32x384xbf16>
    %c0_6 = arith.constant 0 : index
    %c0_7 = arith.constant 0 : index
    %10 = vector.load %arg7[%c0_6, %c0_7] : memref<32x384xbf16, #tpu.memory_space<vmem>>, vector<32x384xbf16>
    tpu.vector_store %arg7[%c0_6, %c0_7], %9 {strides = array<i32>} : memref<32x384xbf16, #tpu.memory_space<vmem>>, vector<32x384xbf16>,
    return
  }
  func.func @transform_0(%arg0: i32, %arg1: i32) -> (i32, i32) {
    %c0_i32 = arith.constant 0 : i32
    %c0_i32_0 = arith.constant 0 : i32
    return %arg0, %c0_i32 : i32, i32
  }
  func.func @transform_1(%arg0: i32, %arg1: i32) -> (i32, i32) {
    %c0_i32 = arith.constant 0 : i32
    %c0_i32_0 = arith.constant 0 : i32
    %c0_i32_1 = arith.constant 0 : i32
    return %c0_i32, %c0_i32_0 : i32, i32
  }
  func.func @transform_2(%arg0: i32, %arg1: i32) -> (i32, i32) {
    %c0_i32 = arith.constant 0 : i32
    %c0_i32_0 = arith.constant 0 : i32
    %c0_i32_1 = arith.constant 0 : i32
    return %c0_i32, %c0_i32_0 : i32, i32
  }
  func.func @transform_3(%arg0: i32, %arg1: i32) -> (i32, i32) {
    %c0_i32 = arith.constant 0 : i32
    %c0_i32_0 = arith.constant 0 : i32
    return %c0_i32, %arg1 : i32, i32
  }
  func.func @transform_4(%arg0: i32, %arg1: i32) -> (i32, i32) {
    %c0_i32 = arith.constant 0 : i32
    %c0_i32_0 = arith.constant 0 : i32
    return %c0_i32, %arg1 : i32, i32
  }
  func.func @transform_5(%arg0: i32, %arg1: i32) -> (i32, i32) {
    %c0_i32 = arith.constant 0 : i32
    return %arg0, %arg1 : i32, i32
  }
}

</mosaic_0001>

<llo_original>
// kernel: tpu_custom_call.1
$region0: #{tpu_custom_call.1}
  #allocation0 [shape = 'u32[]', space=smem, size = 0x4, offset = 0x4, fixed_abs, tag = 'smem constant byte address 0x4 - core index']
  #allocation1 [shape = 'u32[72,128]{1,0:T(1,128)}', space=vmem, size = 0x9000, scoped, tag = 'internal scratch']
  #allocation2 [shape = 'bf16[32,128]{1,0:T(8,128)(2,1)}', space=vmem, size = 0x2000, scoped, tag = 'scratch operand']
  %s0 = inlined_call_operand.hbm [shape: f32[32,128], index: 0, kind: input, shape index: {}]
  %s1 = inlined_call_operand.hbm [shape: f32[1,128], index: 1, kind: input, shape index: {}]
  %s2 = inlined_call_operand.hbm [shape: f32[1,128], index: 2, kind: input, shape index: {}]
  %s3 = inlined_call_operand.hbm [shape: bf16[128,384], index: 3, kind: input, shape index: {}]
  %s4 = inlined_call_operand.vmem [shape: f32[1,384], index: 4, kind: input, shape index: {}]
  %s5 = inlined_call_operand.hbm [shape: bf16[32,384], index: 5, kind: output, shape index: {}]
  %s6 = sld [smem:[#allocation0]]
  $region50: #{tpu_custom_call.1} parent=0
    _
  %s8 = ssub.s32 1, %s6
  %s9 = scalar_select 0, %s8, %s6
  $region1: #{tpu_custom_call.1} parent=0
    #allocation3 [shape = 'u8[16384]{0}', space=vmem, size = 0x4000, scoped, tag = 'input window, operand 0, single buffered']
    #allocation4 [shape = 's32[1]{0}', space=sflag, size = 0x4, scoped, tag = 'scoped memory for tpu_custom_call.1']
    #allocation5 [shape = 's32[1]{0}', space=sflag, size = 0x4, scoped, tag = 'scoped memory for tpu_custom_call.1']
    #allocation6 [shape = 'u8[512]{0}', space=vmem, size = 0x400, scoped, tag = 'input window, operand 1, single buffered']
    #allocation7 [shape = 's32[1]{0}', space=sflag, size = 0x4, scoped, tag = 'scoped memory for tpu_custom_call.1']
    #allocation8 [shape = 'u8[512]{0}', space=vmem, size = 0x400, scoped, tag = 'input window, operand 2, single buffered']
    #allocation9 [shape = 'u8[98304]{0}', space=vmem, size = 0x18000, scoped, tag = 'input window, operand 3, single buffered']
    #allocation10 [shape = 's32[1]{0}', space=sflag, size = 0x4, scoped, tag = 'scoped memory for tpu_custom_call.1']
    #allocation11 [shape = 'u8[24576]{0}', space=vmem, size = 0x6000, scoped, tag = 'output window, operand 0, single buffered']
    %10 = vsyncpa [#allocation4], 0
    %11 = vsyncpa [#allocation7], 0
    %12 = vsyncpa [#allocation10], 0
    %13 = vsyncpa [#allocation5], 0
    // Predicated region
    $region2: #{tpu_custom_call.1} parent=1 // pred_check
      _
    $region3: #{tpu_custom_call.1} parent=1 // pred_check_branch
      %15 = sbr.rel (0) target = $region5
    $region4: #{tpu_custom_call.1} parent=1 // pred_region
      %17 = vsyncadd [#allocation4], 0
      %s18 = sshll.u32 %s0, 4
      %s19 = int_to_ptr.hbm [resolvable:$true] %s18
      %s20 = sshll.u32 [#allocation3], 4
      %s21 = int_to_ptr.vmem [resolvable:$true] %s20
      %26 = dma.hbm_to_vmem [thread:$0]  %s19, 512, %s21, [#allocation4], 128, 128, 8
    $region5: #{tpu_custom_call.1} parent=1 // pred_fallthru
      _
    // Predicated region
    $region6: #{tpu_custom_call.1} parent=1 // pred_check
      _
    $region7: #{tpu_custom_call.1} parent=1 // pred_check_branch
      %28 = sbr.rel (0) target = $region9
    $region8: #{tpu_custom_call.1} parent=1 // pred_region
      %30 = vsyncadd [#allocation7], 0
      %s32 = sshll.u32 %s1, 4
      %s33 = int_to_ptr.hbm [resolvable:$true] %s32
      %s34 = sshll.u32 [#allocation6], 4
      %s35 = int_to_ptr.vmem [resolvable:$true] %s34
      %37 = dma.hbm_to_vmem [thread:$0]  %s33, 16, %s35, [#allocation7]
    $region9: #{tpu_custom_call.1} parent=1 // pred_fallthru
      _
    // Predicated region
    $region10: #{tpu_custom_call.1} parent=1 // pred_check
      _
    $region11: #{tpu_custom_call.1} parent=1 // pred_check_branch
      %39 = sbr.rel (0) target = $region13
    $region12: #{tpu_custom_call.1} parent=1 // pred_region
      %41 = vsyncadd [#allocation7], 0
      %s43 = sshll.u32 %s2, 4
      %s44 = int_to_ptr.hbm [resolvable:$true] %s43
      %s45 = sshll.u32 [#allocation8], 4
      %s46 = int_to_ptr.vmem [resolvable:$true] %s45
      %48 = dma.hbm_to_vmem [thread:$0]  %s44, 16, %s46, [#allocation7]
    $region13: #{tpu_custom_call.1} parent=1 // pred_fallthru
      _
    // Predicated region
    $region14: #{tpu_custom_call.1} parent=1 // pred_check
      _
    $region15: #{tpu_custom_call.1} parent=1 // pred_check_branch
      %50 = sbr.rel (0) target = $region17
    $region16: #{tpu_custom_call.1} parent=1 // pred_region
      %52 = vsyncadd [#allocation10], 0
      %s53 = sshll.u32 %s3, 4
      %s54 = int_to_ptr.hbm [resolvable:$true] %s53
      %s55 = sshll.u32 [#allocation9], 4
      %s56 = int_to_ptr.vmem [resolvable:$true] %s55
      %61 = dma.hbm_to_vmem [thread:$0]  %s54, 3072, %s56, [#allocation10], 192, 192, 12
    $region17: #{tpu_custom_call.1} parent=1 // pred_fallthru
      _
    // Predicated region
    $region18: #{tpu_custom_call.1} parent=1 // pred_check
      _
    $region19: #{tpu_custom_call.1} parent=1 // pred_check_branch
      %63 = sbr.rel (0) target = $region21
    $region20: #{tpu_custom_call.1} parent=1 // pred_region
      _
    $region21: #{tpu_custom_call.1} parent=1 // pred_fallthru
      _
    // Predicated region
    $region22: #{tpu_custom_call.1} parent=1 // pred_check
      _
    $region23: #{tpu_custom_call.1} parent=1 // pred_check_branch
      %65 = sbr.rel (0) target = $region25
    $region24: #{tpu_custom_call.1} parent=1 // pred_region
      %67 = dma.done [#allocation4], 512
    $region25: #{tpu_custom_call.1} parent=1 // pred_fallthru
      _
    // Predicated region
    $region26: #{tpu_custom_call.1} parent=1 // pred_check
      _
    $region27: #{tpu_custom_call.1} parent=1 // pred_check_branch
      %69 = sbr.rel (0) target = $region29
    $region28: #{tpu_custom_call.1} parent=1 // pred_region
      %71 = dma.done [#allocation7], 16
    $region29: #{tpu_custom_call.1} parent=1 // pred_fallthru
      _
    // Predicated region
    $region30: #{tpu_custom_call.1} parent=1 // pred_check
      _
    $region31: #{tpu_custom_call.1} parent=1 // pred_check_branch
      %73 = sbr.rel (0) target = $region33
    $region32: #{tpu_custom_call.1} parent=1 // pred_region
      %75 = dma.done [#allocation7], 16
    $region33: #{tpu_custom_call.1} parent=1 // pred_fallthru
      _
    // Predicated region
    $region34: #{tpu_custom_call.1} parent=1 // pred_check
      _
    $region35: #{tpu_custom_call.1} parent=1 // pred_check_branch
      %77 = sbr.rel (0) target = $region37
    $region36: #{tpu_custom_call.1} parent=1 // pred_region
      %79 = dma.done [#allocation10], 3072
    $region37: #{tpu_custom_call.1} parent=1 // pred_fallthru
      _
    %p80 = scmp.eq.s32.totalorder 0, 0
    // Predicated region
    $region38: #{tpu_custom_call.1} parent=1 // pred_check
      %p81 = pneg %p80
    $region39: #{tpu_custom_call.1} parent=1 // pred_check_branch
      %83 = sbr.rel (%p81) target = $region41
    $region40: #{tpu_custom_call.1} parent=1 // pred_region
      %v84 = vld [vmem:[#allocation3] sm:$0xff]
      %v85 = vld [vmem:[#allocation3 + $0x8] sm:$0xff]
      %v86 = vld [vmem:[#allocation3 + $0x10] sm:$0xff]
      %v87 = vld [vmem:[#allocation3 + $0x18] sm:$0xff]
      %v88 = vld [vmem:[#allocation6] sm:$0x1]
      %v89 = vld [vmem:[#allocation8] sm:$0x1]
      %90 = vadd.xlane.f32.xlu0 %v84
      %v91 = vpop.xlane.xlu0 %90
      %92 = vadd.xlane.f32.xlu0 %v85
      %v93 = vpop.xlane.xlu0 %92
      %94 = vadd.xlane.f32.xlu0 %v86
      %v95 = vpop.xlane.xlu0 %94
      %96 = vadd.xlane.f32.xlu0 %v87
      %v97 = vpop.xlane.xlu0 %96
      %v98 = vrcp.pop 128.0
      %v99 = vmul.f32 128.0, %v98
      %v100 = vsub.f32 1.0, %v99
      %v101 = vmul.f32 %v98, %v100
      %v102 = vadd.f32 %v98, %v101
      %vm103 = vweird.f32 %v98
      %v104 = vsel %vm103, %v98, %v102
      %v105 = vmul.f32 %v91, %v104
      %v106 = vmul.f32 %v93, %v104
      %v107 = vmul.f32 %v95, %v104
      %v108 = vmul.f32 %v97, %v104
      %v109 = vsub.f32 %v84, %v105
      %v110 = vsub.f32 %v85, %v106
      %v111 = vsub.f32 %v86, %v107
      %v112 = vsub.f32 %v87, %v108
      %v113 = vmul.f32 %v109, %v109
      %v114 = vmul.f32 %v110, %v110
      %v115 = vmul.f32 %v111, %v111
      %v116 = vmul.f32 %v112, %v112
      %117 = vadd.xlane.f32.xlu0 %v113
      %v118 = vpop.xlane.xlu0 %117
      %119 = vadd.xlane.f32.xlu0 %v114
      %v120 = vpop.xlane.xlu0 %119
      %121 = vadd.xlane.f32.xlu0 %v115
      %v122 = vpop.xlane.xlu0 %121
      %123 = vadd.xlane.f32.xlu0 %v116
      %v124 = vpop.xlane.xlu0 %123
      %v125 = vmul.f32 %v118, %v104
      %v126 = vmul.f32 %v120, %v104
      %v127 = vmul.f32 %v122, %v104
      %v128 = vmul.f32 %v124, %v104
      %v129 = vadd.f32 %v125, 1e-05
      %v130 = vadd.f32 %v126, 1e-05
      %v131 = vadd.f32 %v127, 1e-05
      %v132 = vadd.f32 %v128, 1e-05
      %v133 = vrsqrt.pop %v129
      %v134 = vmul.f32 %v133, %v129
      %v135 = vmul.f32 %v134, %v133
      %v136 = vmul.f32 0.5, %v135
      %v137 = vsub.f32 1.5, %v136
      %v138 = vmul.f32 %v133, %v137
      %vm139 = vweird.f32 %v129
      %vm140 = vweird.f32 %v133
      %vm141 = vmor %vm139, %vm140
      %v142 = vsel %vm141, %v133, %v138
      %v143 = vrsqrt.pop %v130
      %v144 = vmul.f32 %v143, %v130
      %v145 = vmul.f32 %v144, %v143
      %v146 = vmul.f32 0.5, %v145
      %v147 = vsub.f32 1.5, %v146
      %v148 = vmul.f32 %v143, %v147
      %vm149 = vweird.f32 %v130
      %vm150 = vweird.f32 %v143
      %vm151 = vmor %vm149, %vm150
      %v152 = vsel %vm151, %v143, %v148
      %v153 = vrsqrt.pop %v131
      %v154 = vmul.f32 %v153, %v131
      %v155 = vmul.f32 %v154, %v153
      %v156 = vmul.f32 0.5, %v155
      %v157 = vsub.f32 1.5, %v156
      %v158 = vmul.f32 %v153, %v157
      %vm159 = vweird.f32 %v131
      %vm160 = vweird.f32 %v153
      %vm161 = vmor %vm159, %vm160
      %v162 = vsel %vm161, %v153, %v158
      %v163 = vrsqrt.pop %v132
      %v164 = vmul.f32 %v163, %v132
      %v165 = vmul.f32 %v164, %v163
      %v166 = vmul.f32 0.5, %v165
      %v167 = vsub.f32 1.5, %v166
      %v168 = vmul.f32 %v163, %v167
      %vm169 = vweird.f32 %v132
      %vm170 = vweird.f32 %v163
      %vm171 = vmor %vm169, %vm170
      %v172 = vsel %vm171, %v163, %v168
      %v173 = vmul.f32 %v109, %v142
      %v174 = vmul.f32 %v110, %v152
      %v175 = vmul.f32 %v111, %v162
      %v176 = vmul.f32 %v112, %v172
      %v178 = vperm.slane %v88, 0
      %v180 = vmul.f32 %v173, %v178
      %v181 = vmul.f32 %v174, %v178
      %v182 = vmul.f32 %v175, %v178
      %v183 = vmul.f32 %v176, %v178
      %v185 = vperm.slane %v89, 0
      %v187 = vadd.f32 %v180, %v185
      %v188 = vadd.f32 %v181, %v185
      %v189 = vadd.f32 %v182, %v185
      %v190 = vadd.f32 %v183, %v185
      %v191 = vpack.c.bf16 %v187, %v187
      %v192 = vpack.c.bf16 %v188, %v188
      %v193 = vpack.c.bf16 %v189, %v189
      %v194 = vpack.c.bf16 %v190, %v190
      %195 = vst [vmem:[#allocation2] sm:$0xf] %v191
      %196 = vst [vmem:[#allocation2 + $0x4] sm:$0xf] %v192
      %197 = vst [vmem:[#allocation2 + $0x8] sm:$0xf] %v193
      %198 = vst [vmem:[#allocation2 + $0xc] sm:$0xf] %v194
    $region41: #{tpu_custom_call.1} parent=1 // pred_fallthru
      _
    %v199 = vld [vmem:[#allocation2] sm:$0xf]
    %v200 = vld [vmem:[#allocation2 + $0x4] sm:$0xf]
    %v201 = vld [vmem:[#allocation2 + $0x8] sm:$0xf]
    %v202 = vld [vmem:[#allocation2 + $0xc] sm:$0xf]
    %v203 = vld [vmem:[#allocation9] sm:$0xff]
    %v204 = vld [vmem:[#allocation9 + $0x8] sm:$0xf]
    %v205 = vld [vmem:[#allocation9 + $0xc] sm:$0xff]
    %v206 = vld [vmem:[#allocation9 + $0x14] sm:$0xf]
    %v207 = vld [vmem:[#allocation9 + $0x18] sm:$0xff]
    %v208 = vld [vmem:[#allocation9 + $0x20] sm:$0xf]
    %v209 = vld [vmem:[#allocation9 + $0x24] sm:$0xff]
    %v210 = vld [vmem:[#allocation9 + $0x2c] sm:$0xf]
    %v211 = vld [vmem:[#allocation9 + $0x30] sm:$0xff]
    %v212 = vld [vmem:[#allocation9 + $0x38] sm:$0xf]
    %v213 = vld [vmem:[#allocation9 + $0x3c] sm:$0xff]
    %v214 = vld [vmem:[#allocation9 + $0x44] sm:$0xf]
    %v215 = vld [vmem:[#allocation9 + $0x48] sm:$0xff]
    %v216 = vld [vmem:[#allocation9 + $0x50] sm:$0xf]
    %v217 = vld [vmem:[#allocation9 + $0x54] sm:$0xff]
    %v218 = vld [vmem:[#allocation9 + $0x5c] sm:$0xf]
    %v219 = vld [vmem:[#allocation9 + $0x60] sm:$0xff]
    %v220 = vld [vmem:[#allocation9 + $0x68] sm:$0xf]
    %v221 = vld [vmem:[#allocation9 + $0x6c] sm:$0xff]
    %v222 = vld [vmem:[#allocation9 + $0x74] sm:$0xf]
    %v223 = vld [vmem:[#allocation9 + $0x78] sm:$0xff]
    %v224 = vld [vmem:[#allocation9 + $0x80] sm:$0xf]
    %v225 = vld [vmem:[#allocation9 + $0x84] sm:$0xff]
    %v226 = vld [vmem:[#allocation9 + $0x8c] sm:$0xf]
    %v227 = vld [vmem:[#allocation9 + $0x90] sm:$0xff]
    %v228 = vld [vmem:[#allocation9 + $0x98] sm:$0xf]
    %v229 = vld [vmem:[#allocation9 + $0x9c] sm:$0xff]
    %v230 = vld [vmem:[#allocation9 + $0xa4] sm:$0xf]
    %v231 = vld [vmem:[#allocation9 + $0xa8] sm:$0xff]
    %v232 = vld [vmem:[#allocation9 + $0xb0] sm:$0xf]
    %v233 = vld [vmem:[#allocation9 + $0xb4] sm:$0xff]
    %v234 = vld [vmem:[#allocation9 + $0xbc] sm:$0xf]
    %v235 = vld [vmem:[%s4] sm:$0x7]
    %v237 = vperm.slane %v235, 0
    %v238 = vperm.slane %v235, 1
    %v239 = vperm.slane %v235, 2
    %v247 = vunpack.c.l.b16 %v199
    %v248 = vunpack.c.l.b16 %v200
    %v249 = vunpack.c.l.b16 %v201
    %v250 = vunpack.c.l.b16 %v202
    %v251 = vpack.c.b16 %v248, %v247
    %v252 = vpack.c.b16 %v250, %v249
    %v287 = vunpack.c.l.b16 %v203
    %v288 = vunpack.c.h.b16 %v203
    %v289 = vunpack.c.l.b16 %v204
    %v290 = vunpack.c.l.b16 %v205
    %v291 = vunpack.c.h.b16 %v205
    %v292 = vunpack.c.l.b16 %v206
    %v293 = vunpack.c.l.b16 %v207
    %v294 = vunpack.c.h.b16 %v207
    %v295 = vunpack.c.l.b16 %v208
    %v296 = vunpack.c.l.b16 %v209
    %v297 = vunpack.c.h.b16 %v209
    %v298 = vunpack.c.l.b16 %v210
    %v299 = vunpack.c.l.b16 %v211
    %v300 = vunpack.c.h.b16 %v211
    %v301 = vunpack.c.l.b16 %v212
    %v302 = vunpack.c.l.b16 %v213
    %v303 = vunpack.c.h.b16 %v213
    %v304 = vunpack.c.l.b16 %v214
    %v305 = vunpack.c.l.b16 %v215
    %v306 = vunpack.c.h.b16 %v215
    %v307 = vunpack.c.l.b16 %v216
    %v308 = vunpack.c.l.b16 %v217
    %v309 = vunpack.c.h.b16 %v217
    %v310 = vunpack.c.l.b16 %v218
    %v311 = vunpack.c.l.b16 %v219
    %v312 = vunpack.c.h.b16 %v219
    %v313 = vunpack.c.l.b16 %v220
    %v314 = vunpack.c.l.b16 %v221
    %v315 = vunpack.c.h.b16 %v221
    %v316 = vunpack.c.l.b16 %v222
    %v317 = vunpack.c.l.b16 %v223
    %v318 = vunpack.c.h.b16 %v223
    %v319 = vunpack.c.l.b16 %v224
    %v320 = vunpack.c.l.b16 %v225
    %v321 = vunpack.c.h.b16 %v225
    %v322 = vunpack.c.l.b16 %v226
    %v323 = vunpack.c.l.b16 %v227
    %v324 = vunpack.c.h.b16 %v227
    %v325 = vunpack.c.l.b16 %v228
    %v326 = vunpack.c.l.b16 %v229
    %v327 = vunpack.c.h.b16 %v229
    %v328 = vunpack.c.l.b16 %v230
    %v329 = vunpack.c.l.b16 %v231
    %v330 = vunpack.c.h.b16 %v231
    %v331 = vunpack.c.l.b16 %v232
    %v332 = vunpack.c.l.b16 %v233
    %v333 = vunpack.c.h.b16 %v233
    %v334 = vunpack.c.l.b16 %v234
    %v335 = vpack.c.b16 %v290, %v287
    %v336 = vpack.c.b16 %v291, %v288
    %v337 = vpack.c.b16 %v292, %v289
    %v338 = vpack.c.b16 %v296, %v293
    %v339 = vpack.c.b16 %v297, %v294
    %v340 = vpack.c.b16 %v298, %v295
    %v341 = vpack.c.b16 %v302, %v299
    %v342 = vpack.c.b16 %v303, %v300
    %v343 = vpack.c.b16 %v304, %v301
    %v344 = vpack.c.b16 %v308, %v305
    %v345 = vpack.c.b16 %v309, %v306
    %v346 = vpack.c.b16 %v310, %v307
    %v347 = vpack.c.b16 %v314, %v311
    %v348 = vpack.c.b16 %v315, %v312
    %v349 = vpack.c.b16 %v316, %v313
    %v350 = vpack.c.b16 %v320, %v317
    %v351 = vpack.c.b16 %v321, %v318
    %v352 = vpack.c.b16 %v322, %v319
    %v353 = vpack.c.b16 %v326, %v323
    %v354 = vpack.c.b16 %v327, %v324
    %v355 = vpack.c.b16 %v328, %v325
    %v356 = vpack.c.b16 %v332, %v329
    %v357 = vpack.c.b16 %v333, %v330
    %v358 = vpack.c.b16 %v334, %v331
    %383 = vmatpush.bf16.msra.mxu0 %v356
    %384 = vmatpush.bf16.msra.mxu0 %v353
    %385 = vmatpush.bf16.msra.mxu0 %v350
    %386 = vmatpush.bf16.msra.mxu0 %v347
    %387 = vmatpush.bf16.msra.mxu0 %v344
    %388 = vmatpush.bf16.msra.mxu0 %v341
    %389 = vmatpush.bf16.msra.mxu0 %v338
    %390 = vmatpush.bf16.msra.mxu0 %v335
    %391 = vmatmul.bf16.gmra.mxu0 %v251
    %v392 = vpop.f32.mrf.mxu0
    %v393 = vadd.f32 %v237, %v392
    %v394 = vpop.f32.mrf.mxu0
    %v395 = vadd.f32 %v237, %v394
    %396 = vmatmul.bf16.gmra.mxu0 %v252
    %v397 = vpop.f32.mrf.mxu0
    %v398 = vadd.f32 %v237, %v397
    %v399 = vpop.f32.mrf.mxu0
    %v400 = vadd.f32 %v237, %v399
    %401 = vdwg.mxu0
    %402 = vmatpush.bf16.msra.mxu0 %v357
    %403 = vmatpush.bf16.msra.mxu0 %v354
    %404 = vmatpush.bf16.msra.mxu0 %v351
    %405 = vmatpush.bf16.msra.mxu0 %v348
    %406 = vmatpush.bf16.msra.mxu0 %v345
    %407 = vmatpush.bf16.msra.mxu0 %v342
    %408 = vmatpush.bf16.msra.mxu0 %v339
    %409 = vmatpush.bf16.msra.mxu0 %v336
    %410 = vmatmul.bf16.gmra.mxu0 %v251
    %v411 = vpop.f32.mrf.mxu0
    %v412 = vadd.f32 %v238, %v411
    %v413 = vpop.f32.mrf.mxu0
    %v414 = vadd.f32 %v238, %v413
    %415 = vmatmul.bf16.gmra.mxu0 %v252
    %v416 = vpop.f32.mrf.mxu0
    %v417 = vadd.f32 %v238, %v416
    %v418 = vpop.f32.mrf.mxu0
    %v419 = vadd.f32 %v238, %v418
    %420 = vdwg.mxu0
    %421 = vmatpush.bf16.msra.mxu0 %v358
    %422 = vmatpush.bf16.msra.mxu0 %v355
    %423 = vmatpush.bf16.msra.mxu0 %v352
    %424 = vmatpush.bf16.msra.mxu0 %v349
    %425 = vmatpush.bf16.msra.mxu0 %v346
    %426 = vmatpush.bf16.msra.mxu0 %v343
    %427 = vmatpush.bf16.msra.mxu0 %v340
    %428 = vmatpush.bf16.msra.mxu0 %v337
    %429 = vmatmul.bf16.gmra.mxu0 %v251
    %v430 = vpop.f32.mrf.mxu0
    %v431 = vadd.f32 %v239, %v430
    %v432 = vpop.f32.mrf.mxu0
    %v433 = vadd.f32 %v239, %v432
    %434 = vmatmul.bf16.gmra.mxu0 %v252
    %v435 = vpop.f32.mrf.mxu0
    %v436 = vadd.f32 %v239, %v435
    %v437 = vpop.f32.mrf.mxu0
    %v438 = vadd.f32 %v239, %v437
    %439 = vdwg.mxu0
    %v440 = vpack.c.bf16 %v412, %v393
    %v441 = vpack.c.bf16 %v431, %v431
    %v442 = vpack.c.bf16 %v414, %v395
    %v443 = vpack.c.bf16 %v433, %v433
    %v444 = vpack.c.bf16 %v417, %v398
    %v445 = vpack.c.bf16 %v436, %v436
    %v446 = vpack.c.bf16 %v419, %v400
    %v447 = vpack.c.bf16 %v438, %v438
    %448 = vst [vmem:[#allocation11] sm:$0xff] %v440
    %449 = vst [vmem:[#allocation11 + $0x8] sm:$0xf] %v441
    %450 = vst [vmem:[#allocation11 + $0xc] sm:$0xff] %v442
    %451 = vst [vmem:[#allocation11 + $0x14] sm:$0xf] %v443
    %452 = vst [vmem:[#allocation11 + $0x18] sm:$0xff] %v444
    %453 = vst [vmem:[#allocation11 + $0x20] sm:$0xf] %v445
    %454 = vst [vmem:[#allocation11 + $0x24] sm:$0xff] %v446
    %455 = vst [vmem:[#allocation11 + $0x2c] sm:$0xf] %v447
    // Predicated region
    $region42: #{tpu_custom_call.1} parent=1 // pred_check
      _
    $region43: #{tpu_custom_call.1} parent=1 // pred_check_branch
      %457 = sbr.rel (0) target = $region45
    $region44: #{tpu_custom_call.1} parent=1 // pred_region
      %459 = vsyncadd [#allocation5], 0
      %s460 = sshll.u32 [#allocation11], 4
      %s461 = int_to_ptr.vmem [resolvable:$true] %s460
      %s462 = sshll.u32 %s5, 4
      %s463 = int_to_ptr.hbm [resolvable:$true] %s462
      %468 = dma.vmem_to_hbm [thread:$0]  %s461, 768, %s463, [#allocation5], 192, 192, 12
    $region45: #{tpu_custom_call.1} parent=1 // pred_fallthru
      _
    // Predicated region
    $region46: #{tpu_custom_call.1} parent=1 // pred_check
      _
    $region47: #{tpu_custom_call.1} parent=1 // pred_check_branch
      %470 = sbr.rel (0) target = $region49
    $region48: #{tpu_custom_call.1} parent=1 // pred_region
      %472 = dma.done [#allocation5], 768
    $region49: #{tpu_custom_call.1} parent=1 // pred_fallthru
      _
    %473 = vsyncpa [#allocation4], 1
    %474 = vsyncpa [#allocation7], 1
    %475 = vsyncpa [#allocation10], 1
    %476 = vsyncpa [#allocation5], 1

</llo_original>
